<compile_context>
chip_gen: v7x
topology: tpu7x:2x2x1
jax: 0.10.0
libtpu: 0.0.40
codegen_flags: <defaults>
</compile_context>

<pallas_src>
import jax
import jax.numpy as jnp
from jax import lax
from jax.experimental import pallas as pl
from jax.experimental.pallas import tpu as pltpu


def masked_linear_kernel(x_ref, w_ref, m_ref, b_ref, o_ref, acc_ref):
    """One K-tile of y = x @ (w * mask).T + bias.

    x_ref: [B, tk] f32   w_ref: [N, tk] f32   m_ref: [N, tk] int8
    b_ref: [1, N]  f32   o_ref: [B, N]  f32   acc_ref: [B, N] f32 scratch
    """
    k = pl.program_id(0)

    @pl.when(k == 0)
    def _():
        acc_ref[...] = jnp.zeros_like(acc_ref)

    # Mask-multiply in the weight's native [N, tk] layout (K on lanes).
    wm = w_ref[...] * m_ref[...].astype(w_ref.dtype)            # [N, tk]

    # Contract over the K (lane) axis directly: (B, tk) x (N, tk) -> (B, N).
    # No `.T` -> no XLU transpose of the masked weight before the MXU.
    acc_ref[...] += lax.dot_general(
        x_ref[...], wm,
        dimension_numbers=(((1,), (1,)), ((), ())),
        preferred_element_type=jnp.float32)

    @pl.when(k == pl.num_programs(0) - 1)
    def _():
        # Bias add only once, on the final reduction step.
        o_ref[...] = (acc_ref[...] + b_ref[...]).astype(o_ref.dtype)


def _pick_tk(K, N, max_block_bytes=4 << 20):
    """Whole-K block while the masked-weight tile is small; otherwise tile K."""
    if N * K * 4 <= max_block_bytes:
        return K
    for tk in (2048, 1024, 512, 256, 128):
        if K % tk == 0:
            return tk
    return K  # ragged K: fall back to a single block


def masked_linear(x_flat, weight, mask_i8, bias):
    """x_flat: [B, K] f32, weight: [N, K] f32, mask_i8: [N, K] int8,
    bias: [1, N] f32  ->  [B, N] f32."""
    B, K = x_flat.shape
    N, _ = weight.shape
    tk = _pick_tk(K, N)
    grid = (K // tk,)

    return pl.pallas_call(
        masked_linear_kernel,
        out_shape=jax.ShapeDtypeStruct((B, N), jnp.float32),
        grid_spec=pltpu.PrefetchScalarGridSpec(
            num_scalar_prefetch=0,
            grid=grid,
            in_specs=[
                pl.BlockSpec((B, tk), lambda k: (0, k)),   # x   [B, tk]
                pl.BlockSpec((N, tk), lambda k: (0, k)),   # w   [N, tk]
                pl.BlockSpec((N, tk), lambda k: (0, k)),   # mask[N, tk] int8
                pl.BlockSpec((1, N), lambda k: (0, 0)),    # bias
            ],
            out_specs=pl.BlockSpec((B, N), lambda k: (0, 0)),
            scratch_shapes=[pltpu.VMEM((B, N), jnp.float32)],
        ),
        compiler_params=pltpu.CompilerParams(
            dimension_semantics=("arbitrary",)),           # K is a reduction
    )(x_flat, weight, mask_i8, bias)


def masked_linear_forward(x_nchw, weight, mask, bias):
    """Forward of MaskedLinearWithMask: flatten, mask weight, linear."""
    B = x_nchw.shape[0]
    x_flat = x_nchw.reshape(B, -1)                   # x.view(x.size(0), -1)
    mask_i8 = mask.astype(jnp.int8)                  # 4x fewer HBM bytes
    return masked_linear(x_flat, weight, mask_i8, bias)


if __name__ == "__main__":
    # Shapes consistent with the module: input [2, 4, 16, 16] -> in_features
    # = 1024, out_features = 32, sparsity = 0.8 (80% of weights masked off).
    B, C, H, W = 2, 4, 16, 16
    in_features = C * H * W
    out_features = 32
    sparsity = 0.8

    key = jax.random.PRNGKey(0)
    kx, kw, kb, km = jax.random.split(key, 4)

    # Deterministic nn.Linear-style init: U(-1/sqrt(in), 1/sqrt(in)).
    bound = 1.0 / jnp.sqrt(jnp.float32(in_features))
    weight = jax.random.uniform(kw, (out_features, in_features),
                                jnp.float32, -bound, bound)
    bias = jax.random.uniform(kb, (1, out_features), jnp.float32, -bound, bound)
    # Fixed binary mask (keep prob = 1 - sparsity), the module's buffer.
    mask = (jax.random.uniform(km, (out_features, in_features), jnp.float32)
            >= sparsity).astype(jnp.float32)
    # __init__ also hard-applies the mask to the stored weight.
    weight = weight * mask

    x = jax.random.normal(kx, (B, C, H, W), jnp.float32)

    out = masked_linear_forward(x, weight, mask, bias)
    out = jax.block_until_ready(out)

    # Pure-JAX reference check of the forward semantics.
    ref = x.reshape(B, -1) @ (weight * mask).T + bias
    assert out.shape == (B, out_features)
    assert jnp.allclose(out, ref, atol=1e-5, rtol=1e-5)

    print("KERNEL_OK")
</pallas_src>

<mosaic_0001>
module attributes {stable_mosaic.version = 11 : i64} {
  func.func @masked_linear_kernel(%arg0: i32, %arg1: memref<2x1024xf32, #tpu.memory_space<vmem>>, %arg2: memref<32x1024xf32, #tpu.memory_space<vmem>>, %arg3: memref<32x1024xi8, #tpu.memory_space<vmem>>, %arg4: memref<1x32xf32, #tpu.memory_space<vmem>>, %arg5: memref<2x32xf32, #tpu.memory_space<vmem>>, %arg6: memref<2x32xf32, #tpu.memory_space<vmem>>) attributes {dimension_semantics = [#tpu.dimension_semantics<arbitrary>], iteration_bounds = array<i64: 1>, scalar_prefetch = 0 : i64, scratch_operands = 1 : i64, tpu.core_type = #tpu.core_type<tc>, window_params = [{transform_indices = @transform_0, window_bounds = array<i64: 2, 1024>}, {transform_indices = @transform_1, window_bounds = array<i64: 32, 1024>}, {transform_indices = @transform_2, window_bounds = array<i64: 32, 1024>}, {pipeline_mode = #tpu.pipeline_mode<synchronous>, transform_indices = @transform_3, window_bounds = array<i64: 1, 32>}, {pipeline_mode = #tpu.pipeline_mode<synchronous>, transform_indices = @transform_4, window_bounds = array<i64: 2, 32>}]} {
    %c0_i32 = arith.constant 0 : i32
    %0 = arith.cmpi eq, %arg0, %c0_i32 : i32
    %1 = arith.extui %0 : i1 to i32
    %c0_i32_0 = arith.constant 0 : i32
    %2 = arith.cmpi ne, %1, %c0_i32_0 : i32
    scf.if %2 {
      %cst_12 = arith.constant 0.000000e+00 : f32
      %15 = vector.broadcast %cst_12 : f32 to vector<2x32xf32>
      %c0_13 = arith.constant 0 : index
      %c0_14 = arith.constant 0 : index
      %16 = vector.load %arg6[%c0_13, %c0_14] : memref<2x32xf32, #tpu.memory_space<vmem>>, vector<2x32xf32>
      tpu.vector_store %arg6[%c0_13, %c0_14], %15 {strides = array<i32>} : memref<2x32xf32, #tpu.memory_space<vmem>>, vector<2x32xf32>,
    } else {
    }
    %c0 = arith.constant 0 : index
    %c0_1 = arith.constant 0 : index
    %3 = vector.load %arg2[%c0, %c0_1] : memref<32x1024xf32, #tpu.memory_space<vmem>>, vector<32x1024xf32>
    %c0_2 = arith.constant 0 : index
    %c0_3 = arith.constant 0 : index
    %4 = vector.load %arg3[%c0_2, %c0_3] : memref<32x1024xi8, #tpu.memory_space<vmem>>, vector<32x1024xi8>
    %5 = arith.sitofp %4 : vector<32x1024xi8> to vector<32x1024xf32>
    %6 = arith.mulf %3, %5 : vector<32x1024xf32>
    %c0_4 = arith.constant 0 : index
    %c0_5 = arith.constant 0 : index
    %7 = vector.load %arg6[%c0_4, %c0_5] : memref<2x32xf32, #tpu.memory_space<vmem>>, vector<2x32xf32>
    %c0_6 = arith.constant 0 : index
    %c0_7 = arith.constant 0 : index
    %8 = vector.load %arg1[%c0_6, %c0_7] : memref<2x1024xf32, #tpu.memory_space<vmem>>, vector<2x1024xf32>
    %cst = arith.constant dense<0.000000e+00> : vector<2x32xf32>
    %9 = tpu.matmul %8, %6, %cst {dimension_numbers = #tpu.dot_dimension_numbers<[1], [1], [0], [0], [0, 0, 1, 0], [], []>} : vector<2x1024xf32>, vector<32x1024xf32>, vector<2x32xf32> -> vector<2x32xf32>
    %10 = arith.addf %7, %9 : vector<2x32xf32>
    %c0_8 = arith.constant 0 : index
    %c0_9 = arith.constant 0 : index
    %11 = vector.load %arg6[%c0_8, %c0_9] : memref<2x32xf32, #tpu.memory_space<vmem>>, vector<2x32xf32>
    tpu.vector_store %arg6[%c0_8, %c0_9], %10 {strides = array<i32>} : memref<2x32xf32, #tpu.memory_space<vmem>>, vector<2x32xf32>,
    %c0_i32_10 = arith.constant 0 : i32
    %12 = arith.cmpi eq, %arg0, %c0_i32_10 : i32
    %13 = arith.extui %12 : i1 to i32
    %c0_i32_11 = arith.constant 0 : i32
    %14 = arith.cmpi ne, %13, %c0_i32_11 : i32
    scf.if %14 {
      %c0_12 = arith.constant 0 : index
      %c0_13 = arith.constant 0 : index
      %15 = vector.load %arg6[%c0_12, %c0_13] : memref<2x32xf32, #tpu.memory_space<vmem>>, vector<2x32xf32>
      %c0_14 = arith.constant 0 : index
      %c0_15 = arith.constant 0 : index
      %16 = vector.load %arg4[%c0_14, %c0_15] : memref<1x32xf32, #tpu.memory_space<vmem>>, vector<1x32xf32>
      %17 = vector.broadcast %16 : vector<1x32xf32> to vector<2x32xf32>
      %18 = arith.addf %15, %17 : vector<2x32xf32>
      %c0_16 = arith.constant 0 : index
      %c0_17 = arith.constant 0 : index
      %19 = vector.load %arg5[%c0_16, %c0_17] : memref<2x32xf32, #tpu.memory_space<vmem>>, vector<2x32xf32>
      tpu.vector_store %arg5[%c0_16, %c0_17], %18 {strides = array<i32>} : memref<2x32xf32, #tpu.memory_space<vmem>>, vector<2x32xf32>,
    } else {
    }
    return
  }
  func.func @transform_0(%arg0: i32) -> (i32, i32) {
    %c0_i32 = arith.constant 0 : i32
    %c0_i32_0 = arith.constant 0 : i32
    return %c0_i32, %arg0 : i32, i32
  }
  func.func @transform_1(%arg0: i32) -> (i32, i32) {
    %c0_i32 = arith.constant 0 : i32
    %c0_i32_0 = arith.constant 0 : i32
    return %c0_i32, %arg0 : i32, i32
  }
  func.func @transform_2(%arg0: i32) -> (i32, i32) {
    %c0_i32 = arith.constant 0 : i32
    %c0_i32_0 = arith.constant 0 : i32
    return %c0_i32, %arg0 : i32, i32
  }
  func.func @transform_3(%arg0: i32) -> (i32, i32) {
    %c0_i32 = arith.constant 0 : i32
    %c0_i32_0 = arith.constant 0 : i32
    %c0_i32_1 = arith.constant 0 : i32
    return %c0_i32, %c0_i32_0 : i32, i32
  }
  func.func @transform_4(%arg0: i32) -> (i32, i32) {
    %c0_i32 = arith.constant 0 : i32
    %c0_i32_0 = arith.constant 0 : i32
    %c0_i32_1 = arith.constant 0 : i32
    return %c0_i32, %c0_i32_0 : i32, i32
  }
}

</mosaic_0001>

<llo_original>
// kernel: tpu_custom_call.1
$region0: #{tpu_custom_call.1}
  #allocation0 [shape = 'u32[]', space=smem, size = 0x4, offset = 0x4, fixed_abs, tag = 'smem constant byte address 0x4 - core index']
  #allocation1 [shape = 'u32[144,128]{1,0:T(1,128)}', space=vmem, size = 0x12000, scoped, tag = 'internal scratch']
  #allocation2 [shape = 'f32[2,32]{1,0:T(2,128)}', space=vmem, size = 0x400, scoped, tag = 'scratch operand']
  %s0 = inlined_call_operand.hbm [shape: f32[2,1024], index: 0, kind: input, shape index: {}]
  %s1 = inlined_call_operand.hbm [shape: f32[32,1024], index: 1, kind: input, shape index: {}]
  %s2 = inlined_call_operand.hbm [shape: s8[32,1024], index: 2, kind: input, shape index: {}]
  %s3 = inlined_call_operand.vmem [shape: f32[1,32], index: 3, kind: input, shape index: {}]
  %s4 = inlined_call_operand.hbm [shape: f32[2,32], index: 4, kind: output, shape index: {}]
  %s5 = sld [smem:[#allocation0]]
  $region46: #{tpu_custom_call.1} parent=0
    _
  %s7 = ssub.s32 1, %s5
  %s8 = scalar_select 0, %s7, %s5
  $region1: #{tpu_custom_call.1} parent=0
    #allocation3 [shape = 'u8[8192]{0}', space=vmem, size = 0x2000, scoped, tag = 'input window, operand 0, single buffered']
    #allocation4 [shape = 's32[1]{0}', space=sflag, size = 0x4, scoped, tag = 'scoped memory for tpu_custom_call.1']
    #allocation5 [shape = 's32[1]{0}', space=sflag, size = 0x4, scoped, tag = 'scoped memory for tpu_custom_call.1']
    #allocation6 [shape = 'u8[131072]{0}', space=vmem, size = 0x20000, scoped, tag = 'input window, operand 1, single buffered']
    #allocation7 [shape = 's32[1]{0}', space=sflag, size = 0x4, scoped, tag = 'scoped memory for tpu_custom_call.1']
    #allocation8 [shape = 'u8[32768]{0}', space=vmem, size = 0x8000, scoped, tag = 'input window, operand 2, single buffered']
    #allocation9 [shape = 'u8[1024]{0}', space=vmem, size = 0x400, scoped, tag = 'output window, operand 0, single buffered']
    %9 = vsyncpa [#allocation4], 0
    %10 = vsyncpa [#allocation7], 0
    %11 = vsyncpa [#allocation5], 0
    // Predicated region
    $region2: #{tpu_custom_call.1} parent=1 // pred_check
      _
    $region3: #{tpu_custom_call.1} parent=1 // pred_check_branch
      %13 = sbr.rel (0) target = $region5
    $region4: #{tpu_custom_call.1} parent=1 // pred_region
      %s15 = ssub.s32 256, 256
      %16 = vsyncadd [#allocation4], %s15
      %s18 = sshll.u32 [#allocation3], 4
      %s19 = int_to_ptr.vmem [resolvable:$true] %s18
      %21 = dma.hbm_to_vmem [thread:$0]  %s0, 256, %s19, [#allocation4]
    $region5: #{tpu_custom_call.1} parent=1 // pred_fallthru
      _
    // Predicated region
    $region6: #{tpu_custom_call.1} parent=1 // pred_check
      _
    $region7: #{tpu_custom_call.1} parent=1 // pred_check_branch
      %23 = sbr.rel (0) target = $region9
    $region8: #{tpu_custom_call.1} parent=1 // pred_region
      %s25 = ssub.s32 4096, 4096
      %26 = vsyncadd [#allocation7], %s25
      %s27 = sshll.u32 [#allocation6], 4
      %s28 = int_to_ptr.vmem [resolvable:$true] %s27
      %33 = dma.hbm_to_vmem [thread:$0]  %s1, 4096, %s28, [#allocation7], 1024, 1024, 64
    $region9: #{tpu_custom_call.1} parent=1 // pred_fallthru
      _
    // Predicated region
    $region10: #{tpu_custom_call.1} parent=1 // pred_check
      _
    $region11: #{tpu_custom_call.1} parent=1 // pred_check_branch
      %35 = sbr.rel (0) target = $region13
    $region12: #{tpu_custom_call.1} parent=1 // pred_region
      %s37 = ssub.s32 1024, 1024
      %38 = vsyncadd [#allocation7], %s37
      %s40 = sshll.u32 [#allocation8], 4
      %s41 = int_to_ptr.vmem [resolvable:$true] %s40
      %43 = dma.hbm_to_vmem [thread:$0]  %s2, 1024, %s41, [#allocation7]
    $region13: #{tpu_custom_call.1} parent=1 // pred_fallthru
      _
    // Predicated region
    $region14: #{tpu_custom_call.1} parent=1 // pred_check
      _
    $region15: #{tpu_custom_call.1} parent=1 // pred_check_branch
      %45 = sbr.rel (0) target = $region17
    $region16: #{tpu_custom_call.1} parent=1 // pred_region
      _
    $region17: #{tpu_custom_call.1} parent=1 // pred_fallthru
      _
    // Predicated region
    $region18: #{tpu_custom_call.1} parent=1 // pred_check
      _
    $region19: #{tpu_custom_call.1} parent=1 // pred_check_branch
      %47 = sbr.rel (0) target = $region21
    $region20: #{tpu_custom_call.1} parent=1 // pred_region
      %48 = dma.done [#allocation4], 256
    $region21: #{tpu_custom_call.1} parent=1 // pred_fallthru
      _
    // Predicated region
    $region22: #{tpu_custom_call.1} parent=1 // pred_check
      _
    $region23: #{tpu_custom_call.1} parent=1 // pred_check_branch
      %50 = sbr.rel (0) target = $region25
    $region24: #{tpu_custom_call.1} parent=1 // pred_region
      %51 = dma.done [#allocation7], 4096
    $region25: #{tpu_custom_call.1} parent=1 // pred_fallthru
      _
    // Predicated region
    $region26: #{tpu_custom_call.1} parent=1 // pred_check
      _
    $region27: #{tpu_custom_call.1} parent=1 // pred_check_branch
      %53 = sbr.rel (0) target = $region29
    $region28: #{tpu_custom_call.1} parent=1 // pred_region
      %54 = dma.done [#allocation7], 1024
    $region29: #{tpu_custom_call.1} parent=1 // pred_fallthru
      _
    %p55 = scmp.eq.s32.totalorder 0, 0
    // Predicated region
    $region30: #{tpu_custom_call.1} parent=1 // pred_check
      %p56 = pneg %p55
    $region31: #{tpu_custom_call.1} parent=1 // pred_check_branch
      %58 = sbr.rel (%p56) target = $region33
    $region32: #{tpu_custom_call.1} parent=1 // pred_region
      %vm59 = vcmask 254976
      %60 = vst.msk [vmem:[#allocation2] sm:$0x3] %vm59, 0.0
    $region33: #{tpu_custom_call.1} parent=1 // pred_fallthru
      _
    %v61 = vld [vmem:[#allocation6] sm:$0xff]
    %v62 = vld [vmem:[#allocation6 + $0x8] sm:$0xff]
    %v63 = vld [vmem:[#allocation6 + $0x10] sm:$0xff]
    %v64 = vld [vmem:[#allocation6 + $0x18] sm:$0xff]
    %v65 = vld [vmem:[#allocation6 + $0x20] sm:$0xff]
    %v66 = vld [vmem:[#allocation6 + $0x28] sm:$0xff]
    %v67 = vld [vmem:[#allocation6 + $0x30] sm:$0xff]
    %v68 = vld [vmem:[#allocation6 + $0x38] sm:$0xff]
    %v69 = vld [vmem:[#allocation6 + $0x40] sm:$0xff]
    %v70 = vld [vmem:[#allocation6 + $0x48] sm:$0xff]
    %v71 = vld [vmem:[#allocation6 + $0x50] sm:$0xff]
    %v72 = vld [vmem:[#allocation6 + $0x58] sm:$0xff]
    %v73 = vld [vmem:[#allocation6 + $0x60] sm:$0xff]
    %v74 = vld [vmem:[#allocation6 + $0x68] sm:$0xff]
    %v75 = vld [vmem:[#allocation6 + $0x70] sm:$0xff]
    %v76 = vld [vmem:[#allocation6 + $0x78] sm:$0xff]
    %v77 = vld [vmem:[#allocation6 + $0x80] sm:$0xff]
    %v78 = vld [vmem:[#allocation6 + $0x88] sm:$0xff]
    %v79 = vld [vmem:[#allocation6 + $0x90] sm:$0xff]
    %v80 = vld [vmem:[#allocation6 + $0x98] sm:$0xff]
    %v81 = vld [vmem:[#allocation6 + $0xa0] sm:$0xff]
    %v82 = vld [vmem:[#allocation6 + $0xa8] sm:$0xff]
    %v83 = vld [vmem:[#allocation6 + $0xb0] sm:$0xff]
    %v84 = vld [vmem:[#allocation6 + $0xb8] sm:$0xff]
    %v85 = vld [vmem:[#allocation6 + $0xc0] sm:$0xff]
    %v86 = vld [vmem:[#allocation6 + $0xc8] sm:$0xff]
    %v87 = vld [vmem:[#allocation6 + $0xd0] sm:$0xff]
    %v88 = vld [vmem:[#allocation6 + $0xd8] sm:$0xff]
    %v89 = vld [vmem:[#allocation6 + $0xe0] sm:$0xff]
    %v90 = vld [vmem:[#allocation6 + $0xe8] sm:$0xff]
    %v91 = vld [vmem:[#allocation6 + $0xf0] sm:$0xff]
    %v92 = vld [vmem:[#allocation6 + $0xf8] sm:$0xff]
    %v93 = vld [vmem:[#allocation8] sm:$0xff]
    %v94 = vld [vmem:[#allocation8 + $0x8] sm:$0xff]
    %v95 = vld [vmem:[#allocation8 + $0x10] sm:$0xff]
    %v96 = vld [vmem:[#allocation8 + $0x18] sm:$0xff]
    %v97 = vld [vmem:[#allocation8 + $0x20] sm:$0xff]
    %v98 = vld [vmem:[#allocation8 + $0x28] sm:$0xff]
    %v99 = vld [vmem:[#allocation8 + $0x30] sm:$0xff]
    %v100 = vld [vmem:[#allocation8 + $0x38] sm:$0xff]
    %v101 = vunpack.c.0.s8 %v93
    %v102 = vunpack.c.0.s8 %v94
    %v103 = vunpack.c.0.s8 %v95
    %v104 = vunpack.c.0.s8 %v96
    %v105 = vunpack.c.0.s8 %v97
    %v106 = vunpack.c.0.s8 %v98
    %v107 = vunpack.c.0.s8 %v99
    %v108 = vunpack.c.0.s8 %v100
    %v109 = vunpack.c.1.s8 %v93
    %v110 = vunpack.c.1.s8 %v94
    %v111 = vunpack.c.1.s8 %v95
    %v112 = vunpack.c.1.s8 %v96
    %v113 = vunpack.c.1.s8 %v97
    %v114 = vunpack.c.1.s8 %v98
    %v115 = vunpack.c.1.s8 %v99
    %v116 = vunpack.c.1.s8 %v100
    %v117 = vunpack.c.2.s8 %v93
    %v118 = vunpack.c.2.s8 %v94
    %v119 = vunpack.c.2.s8 %v95
    %v120 = vunpack.c.2.s8 %v96
    %v121 = vunpack.c.2.s8 %v97
    %v122 = vunpack.c.2.s8 %v98
    %v123 = vunpack.c.2.s8 %v99
    %v124 = vunpack.c.2.s8 %v100
    %v125 = vunpack.c.3.s8 %v93
    %v126 = vunpack.c.3.s8 %v94
    %v127 = vunpack.c.3.s8 %v95
    %v128 = vunpack.c.3.s8 %v96
    %v129 = vunpack.c.3.s8 %v97
    %v130 = vunpack.c.3.s8 %v98
    %v131 = vunpack.c.3.s8 %v99
    %v132 = vunpack.c.3.s8 %v100
    %v133 = vcvt.s32.f32 %v101
    %v134 = vcvt.s32.f32 %v102
    %v135 = vcvt.s32.f32 %v103
    %v136 = vcvt.s32.f32 %v104
    %v137 = vcvt.s32.f32 %v105
    %v138 = vcvt.s32.f32 %v106
    %v139 = vcvt.s32.f32 %v107
    %v140 = vcvt.s32.f32 %v108
    %v141 = vcvt.s32.f32 %v109
    %v142 = vcvt.s32.f32 %v110
    %v143 = vcvt.s32.f32 %v111
    %v144 = vcvt.s32.f32 %v112
    %v145 = vcvt.s32.f32 %v113
    %v146 = vcvt.s32.f32 %v114
    %v147 = vcvt.s32.f32 %v115
    %v148 = vcvt.s32.f32 %v116
    %v149 = vcvt.s32.f32 %v117
    %v150 = vcvt.s32.f32 %v118
    %v151 = vcvt.s32.f32 %v119
    %v152 = vcvt.s32.f32 %v120
    %v153 = vcvt.s32.f32 %v121
    %v154 = vcvt.s32.f32 %v122
    %v155 = vcvt.s32.f32 %v123
    %v156 = vcvt.s32.f32 %v124
    %v157 = vcvt.s32.f32 %v125
    %v158 = vcvt.s32.f32 %v126
    %v159 = vcvt.s32.f32 %v127
    %v160 = vcvt.s32.f32 %v128
    %v161 = vcvt.s32.f32 %v129
    %v162 = vcvt.s32.f32 %v130
    %v163 = vcvt.s32.f32 %v131
    %v164 = vcvt.s32.f32 %v132
    %v165 = vmul.f32 %v61, %v133
    %v166 = vmul.f32 %v62, %v134
    %v167 = vmul.f32 %v63, %v135
    %v168 = vmul.f32 %v64, %v136
    %v169 = vmul.f32 %v65, %v137
    %v170 = vmul.f32 %v66, %v138
    %v171 = vmul.f32 %v67, %v139
    %v172 = vmul.f32 %v68, %v140
    %v173 = vmul.f32 %v69, %v141
    %v174 = vmul.f32 %v70, %v142
    %v175 = vmul.f32 %v71, %v143
    %v176 = vmul.f32 %v72, %v144
    %v177 = vmul.f32 %v73, %v145
    %v178 = vmul.f32 %v74, %v146
    %v179 = vmul.f32 %v75, %v147
    %v180 = vmul.f32 %v76, %v148
    %v181 = vmul.f32 %v77, %v149
    %v182 = vmul.f32 %v78, %v150
    %v183 = vmul.f32 %v79, %v151
    %v184 = vmul.f32 %v80, %v152
    %v185 = vmul.f32 %v81, %v153
    %v186 = vmul.f32 %v82, %v154
    %v187 = vmul.f32 %v83, %v155
    %v188 = vmul.f32 %v84, %v156
    %v189 = vmul.f32 %v85, %v157
    %v190 = vmul.f32 %v86, %v158
    %v191 = vmul.f32 %v87, %v159
    %v192 = vmul.f32 %v88, %v160
    %v193 = vmul.f32 %v89, %v161
    %v194 = vmul.f32 %v90, %v162
    %v195 = vmul.f32 %v91, %v163
    %v196 = vmul.f32 %v92, %v164
    %v197 = vld [vmem:[#allocation2] sm:$0x3]
    %v198 = vld [vmem:[#allocation3] sm:$0xff]
    %v199 = vld [vmem:[#allocation3 + $0x8] sm:$0xff]
    %v202 = vcombine.high %v198, %v198
    %v204 = vunpack.c.l.s4 1983009808
    %v205 = vunpack.c.0.s8 %v204
    %v206 = vlaneseq
    %v207 = vshrl.u32 %v206, 7
    %v208 = vsub.s32 %v205, %v207
    %v209 = vrot.slane %v198, %v208
    %v211 = vunpack.c.l.s4 1983009808
    %v212 = vunpack.c.0.s8 %v211
    %v213 = vlaneseq
    %v214 = vshrl.u32 %v213, 7
    %v215 = vsub.s32 %v212, %v214
    %v216 = vrot.slane %v202, %v215
    %v217 = vcombine.high %v209, %v209
    %v218 = vcombine.high %v216, %v216
    %v219 = vcombine.high %v199, %v199
    %v221 = vunpack.c.l.s4 1983009808
    %v222 = vunpack.c.0.s8 %v221
    %v223 = vlaneseq
    %v224 = vshrl.u32 %v223, 7
    %v225 = vsub.s32 %v222, %v224
    %v226 = vrot.slane %v199, %v225
    %v228 = vunpack.c.l.s4 1983009808
    %v229 = vunpack.c.0.s8 %v228
    %v230 = vlaneseq
    %v231 = vshrl.u32 %v230, 7
    %v232 = vsub.s32 %v229, %v231
    %v233 = vrot.slane %v219, %v232
    %v234 = vcombine.high %v226, %v226
    %v235 = vcombine.high %v233, %v233
    %244 = vmatprep.subr.mxu0 %v166
    %245 = vmatpush1.xpose.msra.mxu0 %v165
    %246 = vmatprep.subr.mxu0 %v174
    %247 = vmatpush1.xpose.msra.mxu0 %v173
    %248 = vmatprep.subr.mxu0 %v182
    %249 = vmatpush1.xpose.msra.mxu0 %v181
    %250 = vmatprep.subr.mxu0 %v190
    %251 = vmatpush1.xpose.msra.mxu0 %v189
    %252 = vmatprep.subr.mxu0 0.0
    %253 = vmatpush1.xpose.msra.mxu0 0.0
    %254 = vmatprep.subr.mxu0 0.0
    %255 = vmatpush1.xpose.msra.mxu0 0.0
    %256 = vmatprep.subr.mxu0 0.0
    %257 = vmatpush1.xpose.msra.mxu0 0.0
    %258 = vmatprep.subr.mxu0 0.0
    %259 = vmatpush1.xpose.msra.mxu0 0.0
    %260 = vmatprep.subr.mxu0 0.0
    %261 = vmatpush1.xpose.msra.mxu0 0.0
    %262 = vmatprep.subr.mxu0 0.0
    %263 = vmatpush1.xpose.msra.mxu0 0.0
    %264 = vmatprep.subr.mxu0 0.0
    %265 = vmatpush1.xpose.msra.mxu0 0.0
    %266 = vmatprep.subr.mxu0 0.0
    %267 = vmatpush1.xpose.msra.mxu0 0.0
    %268 = vmatprep.subr.mxu0 0.0
    %269 = vmatpush1.xpose.msra.mxu0 0.0
    %270 = vmatprep.subr.mxu0 0.0
    %271 = vmatpush1.xpose.msra.mxu0 0.0
    %272 = vmatprep.subr.mxu0 0.0
    %273 = vmatpush1.xpose.msra.mxu0 0.0
    %274 = vmatprep.subr.mxu0 0.0
    %275 = vmatpush1.xpose.msra.mxu0 0.0
    %276 = vmatprep.subr.mxu0 0.0
    %277 = vmatpush1.xpose.msra.mxu0 0.0
    %278 = vmatprep.subr.mxu0 0.0
    %279 = vmatpush1.xpose.msra.mxu0 0.0
    %280 = vmatprep.subr.mxu0 0.0
    %281 = vmatpush1.xpose.msra.mxu0 0.0
    %282 = vmatprep.subr.mxu0 0.0
    %283 = vmatpush1.xpose.msra.mxu0 0.0
    %284 = vmatprep.subr.mxu0 0.0
    %285 = vmatpush1.xpose.msra.mxu0 0.0
    %286 = vmatprep.subr.mxu0 0.0
    %287 = vmatpush1.xpose.msra.mxu0 0.0
    %288 = vmatprep.subr.mxu0 0.0
    %289 = vmatpush1.xpose.msra.mxu0 0.0
    %290 = vmatprep.subr.mxu0 0.0
    %291 = vmatpush1.xpose.msra.mxu0 0.0
    %292 = vmatprep.subr.mxu0 0.0
    %293 = vmatpush1.xpose.msra.mxu0 0.0
    %294 = vmatprep.subr.mxu0 0.0
    %295 = vmatpush1.xpose.msra.mxu0 0.0
    %296 = vmatprep.subr.mxu0 0.0
    %297 = vmatpush1.xpose.msra.mxu0 0.0
    %298 = vmatprep.subr.mxu0 0.0
    %299 = vmatpush1.xpose.msra.mxu0 0.0
    %300 = vmatprep.subr.mxu0 0.0
    %301 = vmatpush1.xpose.msra.mxu0 0.0
    %302 = vmatprep.subr.mxu0 0.0
    %303 = vmatpush1.xpose.msra.mxu0 0.0
    %304 = vmatprep.subr.mxu0 0.0
    %305 = vmatpush1.xpose.msra.mxu0 0.0
    %306 = vmatprep.subr.mxu0 0.0
    %307 = vmatpush1.xpose.msra.mxu0 0.0
    %308 = vmatprep.mubr.f32.mxu0 %v217
    %309 = vmatmul.mubr.f32.gmra.mrb[0].mxu0 %v209
    %v310 = vpop.f32.mrb[0].mxu0
    %v311 = vadd.f32 0.0, %v310
    %v312 = vpop.f32.mrb[0].mxu0
    %313 = vdwg.mxu0
    %314 = vmatprep.subr.mxu0 %v168
    %315 = vmatpush1.xpose.msra.mxu0 %v167
    %316 = vmatprep.subr.mxu0 %v176
    %317 = vmatpush1.xpose.msra.mxu0 %v175
    %318 = vmatprep.subr.mxu0 %v184
    %319 = vmatpush1.xpose.msra.mxu0 %v183
    %320 = vmatprep.subr.mxu0 %v192
    %321 = vmatpush1.xpose.msra.mxu0 %v191
    %322 = vmatprep.subr.mxu0 0.0
    %323 = vmatpush1.xpose.msra.mxu0 0.0
    %324 = vmatprep.subr.mxu0 0.0
    %325 = vmatpush1.xpose.msra.mxu0 0.0
    %326 = vmatprep.subr.mxu0 0.0
    %327 = vmatpush1.xpose.msra.mxu0 0.0
    %328 = vmatprep.subr.mxu0 0.0
    %329 = vmatpush1.xpose.msra.mxu0 0.0
    %330 = vmatprep.subr.mxu0 0.0
    %331 = vmatpush1.xpose.msra.mxu0 0.0
    %332 = vmatprep.subr.mxu0 0.0
    %333 = vmatpush1.xpose.msra.mxu0 0.0
    %334 = vmatprep.subr.mxu0 0.0
    %335 = vmatpush1.xpose.msra.mxu0 0.0
    %336 = vmatprep.subr.mxu0 0.0
    %337 = vmatpush1.xpose.msra.mxu0 0.0
    %338 = vmatprep.subr.mxu0 0.0
    %339 = vmatpush1.xpose.msra.mxu0 0.0
    %340 = vmatprep.subr.mxu0 0.0
    %341 = vmatpush1.xpose.msra.mxu0 0.0
    %342 = vmatprep.subr.mxu0 0.0
    %343 = vmatpush1.xpose.msra.mxu0 0.0
    %344 = vmatprep.subr.mxu0 0.0
    %345 = vmatpush1.xpose.msra.mxu0 0.0
    %346 = vmatprep.subr.mxu0 0.0
    %347 = vmatpush1.xpose.msra.mxu0 0.0
    %348 = vmatprep.subr.mxu0 0.0
    %349 = vmatpush1.xpose.msra.mxu0 0.0
    %350 = vmatprep.subr.mxu0 0.0
    %351 = vmatpush1.xpose.msra.mxu0 0.0
    %352 = vmatprep.subr.mxu0 0.0
    %353 = vmatpush1.xpose.msra.mxu0 0.0
    %354 = vmatprep.subr.mxu0 0.0
    %355 = vmatpush1.xpose.msra.mxu0 0.0
    %356 = vmatprep.subr.mxu0 0.0
    %357 = vmatpush1.xpose.msra.mxu0 0.0
    %358 = vmatprep.subr.mxu0 0.0
    %359 = vmatpush1.xpose.msra.mxu0 0.0
    %360 = vmatprep.subr.mxu0 0.0
    %361 = vmatpush1.xpose.msra.mxu0 0.0
    %362 = vmatprep.subr.mxu0 0.0
    %363 = vmatpush1.xpose.msra.mxu0 0.0
    %364 = vmatprep.subr.mxu0 0.0
    %365 = vmatpush1.xpose.msra.mxu0 0.0
    %366 = vmatprep.subr.mxu0 0.0
    %367 = vmatpush1.xpose.msra.mxu0 0.0
    %368 = vmatprep.subr.mxu0 0.0
    %369 = vmatpush1.xpose.msra.mxu0 0.0
    %370 = vmatprep.subr.mxu0 0.0
    %371 = vmatpush1.xpose.msra.mxu0 0.0
    %372 = vmatprep.subr.mxu0 0.0
    %373 = vmatpush1.xpose.msra.mxu0 0.0
    %374 = vmatprep.subr.mxu0 0.0
    %375 = vmatpush1.xpose.msra.mxu0 0.0
    %376 = vmatprep.subr.mxu0 0.0
    %377 = vmatpush1.xpose.msra.mxu0 0.0
    %378 = vmatprep.mubr.f32.mxu0 %v218
    %379 = vmatmul.mubr.f32.gmra.mrb[0].mxu0 %v216
    %v380 = vpop.f32.mrb[0].mxu0
    %v381 = vadd.f32 %v311, %v380
    %v382 = vpop.f32.mrb[0].mxu0
    %383 = vdwg.mxu0
    %384 = vmatprep.subr.mxu0 %v170
    %385 = vmatpush1.xpose.msra.mxu0 %v169
    %386 = vmatprep.subr.mxu0 %v178
    %387 = vmatpush1.xpose.msra.mxu0 %v177
    %388 = vmatprep.subr.mxu0 %v186
    %389 = vmatpush1.xpose.msra.mxu0 %v185
    %390 = vmatprep.subr.mxu0 %v194
    %391 = vmatpush1.xpose.msra.mxu0 %v193
    %392 = vmatprep.subr.mxu0 0.0
    %393 = vmatpush1.xpose.msra.mxu0 0.0
    %394 = vmatprep.subr.mxu0 0.0
    %395 = vmatpush1.xpose.msra.mxu0 0.0
    %396 = vmatprep.subr.mxu0 0.0
    %397 = vmatpush1.xpose.msra.mxu0 0.0
    %398 = vmatprep.subr.mxu0 0.0
    %399 = vmatpush1.xpose.msra.mxu0 0.0
    %400 = vmatprep.subr.mxu0 0.0
    %401 = vmatpush1.xpose.msra.mxu0 0.0
    %402 = vmatprep.subr.mxu0 0.0
    %403 = vmatpush1.xpose.msra.mxu0 0.0
    %404 = vmatprep.subr.mxu0 0.0
    %405 = vmatpush1.xpose.msra.mxu0 0.0
    %406 = vmatprep.subr.mxu0 0.0
    %407 = vmatpush1.xpose.msra.mxu0 0.0
    %408 = vmatprep.subr.mxu0 0.0
    %409 = vmatpush1.xpose.msra.mxu0 0.0
    %410 = vmatprep.subr.mxu0 0.0
    %411 = vmatpush1.xpose.msra.mxu0 0.0
    %412 = vmatprep.subr.mxu0 0.0
    %413 = vmatpush1.xpose.msra.mxu0 0.0
    %414 = vmatprep.subr.mxu0 0.0
    %415 = vmatpush1.xpose.msra.mxu0 0.0
    %416 = vmatprep.subr.mxu0 0.0
    %417 = vmatpush1.xpose.msra.mxu0 0.0
    %418 = vmatprep.subr.mxu0 0.0
    %419 = vmatpush1.xpose.msra.mxu0 0.0
    %420 = vmatprep.subr.mxu0 0.0
    %421 = vmatpush1.xpose.msra.mxu0 0.0
    %422 = vmatprep.subr.mxu0 0.0
    %423 = vmatpush1.xpose.msra.mxu0 0.0
    %424 = vmatprep.subr.mxu0 0.0
    %425 = vmatpush1.xpose.msra.mxu0 0.0
    %426 = vmatprep.subr.mxu0 0.0
    %427 = vmatpush1.xpose.msra.mxu0 0.0
    %428 = vmatprep.subr.mxu0 0.0
    %429 = vmatpush1.xpose.msra.mxu0 0.0
    %430 = vmatprep.subr.mxu0 0.0
    %431 = vmatpush1.xpose.msra.mxu0 0.0
    %432 = vmatprep.subr.mxu0 0.0
    %433 = vmatpush1.xpose.msra.mxu0 0.0
    %434 = vmatprep.subr.mxu0 0.0
    %435 = vmatpush1.xpose.msra.mxu0 0.0
    %436 = vmatprep.subr.mxu0 0.0
    %437 = vmatpush1.xpose.msra.mxu0 0.0
    %438 = vmatprep.subr.mxu0 0.0
    %439 = vmatpush1.xpose.msra.mxu0 0.0
    %440 = vmatprep.subr.mxu0 0.0
    %441 = vmatpush1.xpose.msra.mxu0 0.0
    %442 = vmatprep.subr.mxu0 0.0
    %443 = vmatpush1.xpose.msra.mxu0 0.0
    %444 = vmatprep.subr.mxu0 0.0
    %445 = vmatpush1.xpose.msra.mxu0 0.0
    %446 = vmatprep.subr.mxu0 0.0
    %447 = vmatpush1.xpose.msra.mxu0 0.0
    %448 = vmatprep.mubr.f32.mxu0 %v234
    %449 = vmatmul.mubr.f32.gmra.mrb[0].mxu0 %v226
    %v450 = vpop.f32.mrb[0].mxu0
    %v451 = vadd.f32 %v381, %v450
    %v452 = vpop.f32.mrb[0].mxu0
    %453 = vdwg.mxu0
    %454 = vmatprep.subr.mxu0 %v172
    %455 = vmatpush1.xpose.msra.mxu0 %v171
    %456 = vmatprep.subr.mxu0 %v180
    %457 = vmatpush1.xpose.msra.mxu0 %v179
    %458 = vmatprep.subr.mxu0 %v188
    %459 = vmatpush1.xpose.msra.mxu0 %v187
    %460 = vmatprep.subr.mxu0 %v196
    %461 = vmatpush1.xpose.msra.mxu0 %v195
    %462 = vmatprep.subr.mxu0 0.0
    %463 = vmatpush1.xpose.msra.mxu0 0.0
    %464 = vmatprep.subr.mxu0 0.0
    %465 = vmatpush1.xpose.msra.mxu0 0.0
    %466 = vmatprep.subr.mxu0 0.0
    %467 = vmatpush1.xpose.msra.mxu0 0.0
    %468 = vmatprep.subr.mxu0 0.0
    %469 = vmatpush1.xpose.msra.mxu0 0.0
    %470 = vmatprep.subr.mxu0 0.0
    %471 = vmatpush1.xpose.msra.mxu0 0.0
    %472 = vmatprep.subr.mxu0 0.0
    %473 = vmatpush1.xpose.msra.mxu0 0.0
    %474 = vmatprep.subr.mxu0 0.0
    %475 = vmatpush1.xpose.msra.mxu0 0.0
    %476 = vmatprep.subr.mxu0 0.0
    %477 = vmatpush1.xpose.msra.mxu0 0.0
    %478 = vmatprep.subr.mxu0 0.0
    %479 = vmatpush1.xpose.msra.mxu0 0.0
    %480 = vmatprep.subr.mxu0 0.0
    %481 = vmatpush1.xpose.msra.mxu0 0.0
    %482 = vmatprep.subr.mxu0 0.0
    %483 = vmatpush1.xpose.msra.mxu0 0.0
    %484 = vmatprep.subr.mxu0 0.0
    %485 = vmatpush1.xpose.msra.mxu0 0.0
    %486 = vmatprep.subr.mxu0 0.0
    %487 = vmatpush1.xpose.msra.mxu0 0.0
    %488 = vmatprep.subr.mxu0 0.0
    %489 = vmatpush1.xpose.msra.mxu0 0.0
    %490 = vmatprep.subr.mxu0 0.0
    %491 = vmatpush1.xpose.msra.mxu0 0.0
    %492 = vmatprep.subr.mxu0 0.0
    %493 = vmatpush1.xpose.msra.mxu0 0.0
    %494 = vmatprep.subr.mxu0 0.0
    %495 = vmatpush1.xpose.msra.mxu0 0.0
    %496 = vmatprep.subr.mxu0 0.0
    %497 = vmatpush1.xpose.msra.mxu0 0.0
    %498 = vmatprep.subr.mxu0 0.0
    %499 = vmatpush1.xpose.msra.mxu0 0.0
    %500 = vmatprep.subr.mxu0 0.0
    %501 = vmatpush1.xpose.msra.mxu0 0.0
    %502 = vmatprep.subr.mxu0 0.0
    %503 = vmatpush1.xpose.msra.mxu0 0.0
    %504 = vmatprep.subr.mxu0 0.0
    %505 = vmatpush1.xpose.msra.mxu0 0.0
    %506 = vmatprep.subr.mxu0 0.0
    %507 = vmatpush1.xpose.msra.mxu0 0.0
    %508 = vmatprep.subr.mxu0 0.0
    %509 = vmatpush1.xpose.msra.mxu0 0.0
    %510 = vmatprep.subr.mxu0 0.0
    %511 = vmatpush1.xpose.msra.mxu0 0.0
    %512 = vmatprep.subr.mxu0 0.0
    %513 = vmatpush1.xpose.msra.mxu0 0.0
    %514 = vmatprep.subr.mxu0 0.0
    %515 = vmatpush1.xpose.msra.mxu0 0.0
    %516 = vmatprep.subr.mxu0 0.0
    %517 = vmatpush1.xpose.msra.mxu0 0.0
    %518 = vmatprep.mubr.f32.mxu0 %v235
    %519 = vmatmul.mubr.f32.gmra.mrb[0].mxu0 %v233
    %v520 = vpop.f32.mrb[0].mxu0
    %v521 = vadd.f32 %v451, %v520
    %v522 = vpop.f32.mrb[0].mxu0
    %523 = vdwg.mxu0
    %v524 = vadd.f32 %v197, %v521
    %vm525 = vcmask 254976
    %526 = vst.msk [vmem:[#allocation2] sm:$0x3] %vm525, %v524
    // Predicated region
    $region34: #{tpu_custom_call.1} parent=1 // pred_check
      %p527 = pneg %p55
    $region35: #{tpu_custom_call.1} parent=1 // pred_check_branch
      %529 = sbr.rel (%p527) target = $region37
    $region36: #{tpu_custom_call.1} parent=1 // pred_region
      %v530 = vld [vmem:[#allocation2] sm:$0x3]
      %v531 = vld [vmem:[%s3] sm:$0x1]
      %v533 = vlaneseq
      %v534 = vshrl.u32 %v533, 7
      %v535 = vsub.s32 0, %v534
      %v536 = vrot.slane %v531, %v535
      %v538 = vadd.f32 %v530, %v536
      %539 = vst.msk [vmem:[#allocation9] sm:$0x3] %vm525, %v538
    $region37: #{tpu_custom_call.1} parent=1 // pred_fallthru
      _
    // Predicated region
    $region38: #{tpu_custom_call.1} parent=1 // pred_check
      _
    $region39: #{tpu_custom_call.1} parent=1 // pred_check_branch
      %541 = sbr.rel (0) target = $region41
    $region40: #{tpu_custom_call.1} parent=1 // pred_region
      %s543 = ssub.s32 32, 32
      %544 = vsyncadd [#allocation5], %s543
      %s546 = sshll.u32 [#allocation9], 4
      %s547 = int_to_ptr.vmem [resolvable:$true] %s546
      %549 = dma.vmem_to_hbm [thread:$0]  %s547, 32, %s4, [#allocation5]
    $region41: #{tpu_custom_call.1} parent=1 // pred_fallthru
      _
    // Predicated region
    $region42: #{tpu_custom_call.1} parent=1 // pred_check
      _
    $region43: #{tpu_custom_call.1} parent=1 // pred_check_branch
      %551 = sbr.rel (0) target = $region45
    $region44: #{tpu_custom_call.1} parent=1 // pred_region
      %552 = dma.done [#allocation5], 32
    $region45: #{tpu_custom_call.1} parent=1 // pred_fallthru
      _
    %553 = vsyncpa [#allocation4], 1
    %554 = vsyncpa [#allocation7], 1
    %555 = vsyncpa [#allocation5], 1

</llo_original>
